<compile_context>
chip_gen: v6e
topology: v6e:2x2x1
jax: 0.10.0
libtpu: 0.0.40
codegen_flags: <defaults>
</compile_context>

<pallas_src>
import jax
import jax.numpy as jnp
from jax import lax
from jax.experimental import pallas as pl
from jax.experimental.pallas import tpu as pltpu

_NEG = -1e30                       # finite "-inf" for lane padding of logits
_VMEM_FALLBACK = 48 * 1024 * 1024  # safe on every generation (v7x has 64 MiB)
_vmem_cache = None


def _round_up(x, m):
    return (x + m - 1) // m * m


def _vmem_limit():
    """~75% of this generation's VMEM (96 MiB on v5e/v6e, 48 MiB on v7x)."""
    global _vmem_cache
    if _vmem_cache is None:
        try:
            cap = getattr(pltpu.get_tpu_info(), "vmem_capacity_bytes", None)
            _vmem_cache = int(cap * 0.75) if cap else _VMEM_FALLBACK
        except Exception:
            _vmem_cache = _VMEM_FALLBACK
    return _vmem_cache


def _compiler_params():
    return pltpu.CompilerParams(dimension_semantics=("parallel",),
                                vmem_limit_bytes=_vmem_limit())


def _resident(shape):
    # Weight blocks: full extent, same block for every grid step (fetched once).
    # TODO(synk): on v7x, pipeline_mode=pl.Buffered(1) would halve their VMEM.
    return pl.BlockSpec(shape, lambda *_: (0,) * len(shape))


def _pick_term_block(B, T, V):
    """Batch-block size for the term kernel: aim for Bb*T ~ 256 MXU rows."""
    if T % 8 != 0:      # keep the in-kernel (Bb,T,s)->(Bb*T,s) collapse legal
        return 1
    bb = max(1, pl.cdiv(256, T))
    # Keep the (Bb*T, V) f32 logits intermediate v7x-VMEM-safe (~12 MiB).
    max_logit_bytes = 12 * 1024 * 1024
    while bb > 1 and bb * T * V * 4 > max_logit_bytes:
        bb -= 1
    return max(1, min(bb, B))


# ----------------------------------------------------------------------------
# Pallas kernels
# ----------------------------------------------------------------------------
def _term_unary_kernel(base_ref, zproj_ref, wog_ref, bog_ref,
                       wa1_ref, ba1_ref, wb1_ref, bb1_ref,
                       wa2_ref, ba2_ref, wb2_ref, bb2_ref,
                       wo_ref, bo_ref, out_ref):
    """Terminal head for a block of Bb batch elements.

    base_ref : (T, s)       f32   term_emb @ W1[:s] + b1  (batch-invariant)
    zproj_ref: (Bb, 1, s)   f32   z[b] @ W1[s:]
    wog_ref  : (Bb, s, Np)  bf16  wo columns gathered at word[b, n]
    bog_ref  : (Bb, 1, Np)  f32   bo entries gathered at word[b, n]
    out_ref  : (Bb, T, Np)  f32   log P(word[b, n] | t)
    """
    f32 = jnp.float32
    Bb = zproj_ref.shape[0]
    T, s = base_ref.shape

    # Flatten the batch block so every matmul runs with M = Bb*T rows.
    h = (base_ref[...][None, :, :] + zproj_ref[...]).reshape(Bb * T, s)

    def res_layer(hh, wa_ref, ba_ref, wb_ref, bb_ref):
        cd = wa_ref.dtype
        t = jnp.dot(hh.astype(cd), wa_ref[...], preferred_element_type=f32)
        t = jnp.maximum(t + ba_ref[...], 0.0)
        t = jnp.dot(t.astype(cd), wb_ref[...], preferred_element_type=f32)
        t = jnp.maximum(t + bb_ref[...], 0.0)
        return hh + t

    h = res_layer(h, wa1_ref, ba1_ref, wb1_ref, bb1_ref)
    h = res_layer(h, wa2_ref, ba2_ref, wb2_ref, bb2_ref)

    h_c = h.astype(wo_ref.dtype)                                        # bf16
    # Full-vocabulary logits only feed the softmax normalizer (max + lse).
    logits = jnp.dot(h_c, wo_ref[...], preferred_element_type=f32) + bo_ref[...]
    m = jnp.max(logits, axis=-1, keepdims=True)                         # (Bb*T,1)
    lse = jnp.log(jnp.sum(jnp.exp(logits - m), axis=-1, keepdims=True))
    norm = (m + lse).reshape(Bb, T, 1)

    # Numerator: per-batch-element gathered columns, small bf16 batched matmul.
    g = lax.dot_general(h_c.reshape(Bb, T, s), wog_ref[...],
                        dimension_numbers=(((2,), (1,)), ((0,), (0,))),
                        preferred_element_type=f32)                     # (Bb,T,Np)
    out_ref[...] = g + bog_ref[...] - norm


def _rule_kernel(base_ref, zrule_ref, out_ref):
    """base: (NT, Rp) f32 (pad cols = _NEG); zrule: (Bb,1,Rp); out: (Bb,NT,Rp)."""
    logits = base_ref[...][None, :, :] + zrule_ref[...]                 # (Bb,NT,Rp)
    m = jnp.max(logits, axis=-1, keepdims=True)
    s = logits - m
    lse = jnp.log(jnp.sum(jnp.exp(s), axis=-1, keepdims=True))
    out_ref[...] = s - lse


# ----------------------------------------------------------------------------
# Pallas wrappers
# ----------------------------------------------------------------------------
def term_unary_pallas(term_params, term_emb, z, word, *, s_dim):
    """Fused terminal head -> unary (B, N, T)."""
    (w1, b1, wa1, ba1, wb1, bb1, wa2, ba2, wb2, bb2, wo, bo) = term_params
    B, N = word.shape
    T = term_emb.shape[0]
    V = wo.shape[1]

    # Factor the first Linear: the term-embedding half is batch-invariant.
    term_base = (term_emb @ w1[:s_dim]).astype(jnp.float32) + b1         # (T, s)
    z_proj = (z @ w1[s_dim:]).astype(jnp.float32)                        # (B, s)

    Np = _round_up(N, 128)                                               # lane-dense
    Bb = _pick_term_block(B, T, V)
    Bp = _round_up(B, Bb)

    # XLA-side gather of the wo columns / bo entries the kernel actually needs.
    word_pad = jnp.zeros((Bp, Np), jnp.int32).at[:B, :N].set(word)
    wo_g = jnp.take(wo, word_pad.reshape(-1), axis=1)                    # (s, Bp*Np)
    wo_g = jnp.swapaxes(wo_g.reshape(s_dim, Bp, Np), 0, 1)               # (Bp,s,Np) bf16
    bo_g = jnp.take(bo[0], word_pad, axis=0).reshape(Bp, 1, Np)          # (Bp,1,Np)
    z_proj_p = jnp.zeros((Bp, 1, s_dim), jnp.float32).at[:B, 0].set(z_proj)

    cost = pl.CostEstimate(
        flops=int(2 * Bp * T * (4 * s_dim * s_dim + s_dim * V + s_dim * Np)),
        transcendentals=int(Bp * T * V),
        bytes_accessed=int((5 * s_dim * s_dim + s_dim * V) * 2            # bf16 W
                           + (T * s_dim + Bp * s_dim + V) * 4
                           + Bp * s_dim * Np * 2 + Bp * Np * 4
                           + Bp * T * Np * 4))

    out = pl.pallas_call(
        _term_unary_kernel,
        out_shape=jax.ShapeDtypeStruct((Bp, T, Np), jnp.float32),
        grid=(Bp // Bb,),
        in_specs=[
            _resident((T, s_dim)),                                # term_base
            pl.BlockSpec((Bb, 1, s_dim), lambda b: (b, 0, 0)),    # z_proj
            pl.BlockSpec((Bb, s_dim, Np), lambda b: (b, 0, 0)),   # gathered wo
            pl.BlockSpec((Bb, 1, Np), lambda b: (b, 0, 0)),       # gathered bo
            _resident(wa1.shape), _resident(ba1.shape),
            _resident(wb1.shape), _resident(bb1.shape),
            _resident(wa2.shape), _resident(ba2.shape),
            _resident(wb2.shape), _resident(bb2.shape),
            _resident(wo.shape), _resident(bo.shape),
        ],
        out_specs=pl.BlockSpec((Bb, T, Np), lambda b: (b, 0, 0)),
        compiler_params=_compiler_params(),
        cost_estimate=cost,
    )(term_base, z_proj_p, wo_g, bo_g,
      wa1, ba1, wb1, bb1, wa2, ba2, wb2, bb2, wo, bo)
    return jnp.swapaxes(out[:B, :, :N], 1, 2)                             # (B,N,T)


def rule_pallas(rule_w, rule_b, nonterm_emb, z, *, s_dim, NT, NT_T):
    """Rule head -> (B, NT, NT_T, NT_T) log-probs."""
    B = z.shape[0]
    R = NT_T * NT_T
    rule_base = (nonterm_emb @ rule_w[:s_dim]).astype(jnp.float32) + rule_b  # (NT,R)
    z_rule = (z @ rule_w[s_dim:]).astype(jnp.float32)                        # (B,R)
    Rp = _round_up(R, 128)
    if Rp != R:
        rule_base = jnp.pad(rule_base, ((0, 0), (0, Rp - R)),
                            constant_values=_NEG)
        z_rule = jnp.pad(z_rule, ((0, 0), (0, Rp - R)))

    Bb = min(8, B)                                 # amortize per-step overhead
    Bp = _round_up(B, Bb)
    z_rule_p = jnp.zeros((Bp, 1, Rp), jnp.float32).at[:B, 0].set(z_rule)

    cost = pl.CostEstimate(
        flops=int(4 * Bp * NT * Rp),
        transcendentals=int(Bp * NT * Rp),
        bytes_accessed=int((NT * Rp + Bp * Rp + 2 * Bp * NT * Rp) * 4))

    out = pl.pallas_call(
        _rule_kernel,
        out_shape=jax.ShapeDtypeStruct((Bp, NT, Rp), jnp.float32),
        grid=(Bp // Bb,),
        in_specs=[_resident((NT, Rp)),
                  pl.BlockSpec((Bb, 1, Rp), lambda b: (b, 0, 0))],
        out_specs=pl.BlockSpec((Bb, NT, Rp), lambda b: (b, 0, 0)),
        compiler_params=_compiler_params(),
        cost_estimate=cost,
    )(rule_base, z_rule_p)
    return out[:B, :, :R].reshape(B, NT, NT_T, NT_T)


# ----------------------------------------------------------------------------
# Parameters (deterministic synthetic init, matches the module's shapes)
# ----------------------------------------------------------------------------
def xavier(key, shape, dtype=jnp.float32):
    fan_in, fan_out = shape[0], shape[1]
    limit = (6.0 / (fan_in + fan_out)) ** 0.5
    return jax.random.uniform(key, shape, jnp.float32, -limit, limit).astype(dtype)


def init_params(key, *, NT, T, V, s_dim, z_dim, w_dim, h_dim):
    NT_T = NT + T
    in_dim = s_dim + z_dim
    keys = iter(jax.random.split(key, 64))

    def mlp_head(out_dim, wdtype):
        # Linear -> ResLayer -> ResLayer -> Linear; biases kept 2D, f32.
        return (
            xavier(next(keys), (in_dim, s_dim), wdtype), jnp.zeros((1, s_dim), jnp.float32),
            xavier(next(keys), (s_dim, s_dim), wdtype), jnp.zeros((1, s_dim), jnp.float32),
            xavier(next(keys), (s_dim, s_dim), wdtype), jnp.zeros((1, s_dim), jnp.float32),
            xavier(next(keys), (s_dim, s_dim), wdtype), jnp.zeros((1, s_dim), jnp.float32),
            xavier(next(keys), (s_dim, s_dim), wdtype), jnp.zeros((1, s_dim), jnp.float32),
            xavier(next(keys), (s_dim, out_dim), wdtype), jnp.zeros((1, out_dim), jnp.float32),
        )

    params = {
        "term_emb": xavier(next(keys), (T, s_dim)),
        "nonterm_emb": xavier(next(keys), (NT, s_dim)),
        "root_emb": xavier(next(keys), (1, s_dim)),
        # Term head streams the big (s_dim, V) weight -> bf16 for the MXU.
        "term_mlp": mlp_head(V, jnp.bfloat16),
        # Root head is tiny and runs in plain XLA -> keep f32.
        "root_mlp": mlp_head(NT, jnp.float32),
        "rule_w": xavier(next(keys), (in_dim, NT_T * NT_T)),
        "rule_b": jnp.zeros((1, NT_T * NT_T), jnp.float32),
        "enc_emb": xavier(next(keys), (V, w_dim)),
        "enc_out_w": xavier(next(keys), (2 * h_dim, 2 * z_dim)),
        "enc_out_b": jnp.zeros((2 * z_dim,), jnp.float32),
    }
    for d in ("fwd", "bwd"):
        params[f"lstm_{d}_wih"] = xavier(next(keys), (4 * h_dim, w_dim))
        params[f"lstm_{d}_whh"] = xavier(next(keys), (4 * h_dim, h_dim))
        params[f"lstm_{d}_bih"] = jnp.zeros((4 * h_dim,), jnp.float32)
        params[f"lstm_{d}_bhh"] = jnp.zeros((4 * h_dim,), jnp.float32)
    return params


# ----------------------------------------------------------------------------
# Encoder (bi-LSTM + masked max) — sequential, kept in plain JAX.
# TODO(synk): the LSTM recurrence has no clean Pallas equivalent; lax.scan with
# the input projection hoisted out of the serial loop.
# ----------------------------------------------------------------------------
def _lstm_dir(x_proj, mask, whh, reverse):
    # x_proj: (B, N, 4h) = xemb @ wih.T + bih + bhh  (precomputed once)
    B = x_proj.shape[0]
    hdim = whh.shape[1]

    def step(carry, inp):
        h, c = carry
        xw_t, m_t = inp
        gates = xw_t + h @ whh.T
        i, f, g, o = jnp.split(gates, 4, axis=-1)
        i = jax.nn.sigmoid(i)
        f = jax.nn.sigmoid(f)
        g = jnp.tanh(g)
        o = jax.nn.sigmoid(o)
        c_new = f * c + i * g
        h_new = o * jnp.tanh(c_new)
        m = m_t[:, None]
        h = jnp.where(m, h_new, h)
        c = jnp.where(m, c_new, c)
        return (h, c), h

    h0 = jnp.zeros((B, hdim), jnp.float32)
    xs = (jnp.swapaxes(x_proj, 0, 1), jnp.swapaxes(mask, 0, 1))
    _, hs = lax.scan(step, (h0, h0), xs, reverse=reverse)
    return jnp.swapaxes(hs, 0, 1)                                       # (B,N,h)


def _encode(params, word, seq_len, z_dim):
    B, N = word.shape
    xemb = params["enc_emb"][word]                                      # (B,N,w)
    mask = jnp.arange(N)[None, :] < seq_len[:, None]                    # (B,N)
    outs = []
    for d, rev in (("fwd", False), ("bwd", True)):
        x_proj = (xemb @ params[f"lstm_{d}_wih"].T
                  + params[f"lstm_{d}_bih"] + params[f"lstm_{d}_bhh"])
        outs.append(_lstm_dir(x_proj, mask, params[f"lstm_{d}_whh"], rev))
    out = jnp.concatenate(outs, axis=-1)                                # (B,N,2h)
    out = jnp.where(mask[..., None], out, -jnp.inf)                     # pad=-inf
    h = jnp.max(out, axis=1)                                            # (B,2h)
    enc = h @ params["enc_out_w"] + params["enc_out_b"]                 # (B,2z)
    return enc[:, :z_dim], enc[:, z_dim:]


def _mlp_apply(x, p):
    w1, b1, wa1, ba1, wb1, bb1, wa2, ba2, wb2, bb2, wo, bo = p
    h = x @ w1 + b1
    t = jax.nn.relu(jax.nn.relu(h @ wa1 + ba1) @ wb1 + bb1)
    h = h + t
    t = jax.nn.relu(jax.nn.relu(h @ wa2 + ba2) @ wb2 + bb2)
    h = h + t
    return h @ wo + bo


# ----------------------------------------------------------------------------
# Forward pass (== CompoundPCFGFixedCostReward.forward, bert_mode='disabled')
# ----------------------------------------------------------------------------
def forward(params, word, seq_len, cfg, evaluating=True, noise_key=None):
    NT, T = cfg["NT"], cfg["T"]
    s_dim, z_dim = cfg["s_dim"], cfg["z_dim"]
    NT_T = NT + T
    B, _ = word.shape

    mean, lvar = _encode(params, word, seq_len, z_dim)

    if evaluating or noise_key is None:
        z = mean
    else:
        eps = jax.random.normal(noise_key, mean.shape, jnp.float32)
        z = jnp.exp(0.5 * lvar) * eps + mean

    # --- roots (B x NT is a handful of vregs: plain XLA, no kernel launch) ---
    root_in = jnp.concatenate(
        [jnp.broadcast_to(params["root_emb"], (B, s_dim)), z], axis=-1)
    root = jax.nn.log_softmax(_mlp_apply(root_in, params["root_mlp"]), axis=-1)

    # --- terms: Pallas kernel, batched over Bb, XLA-gathered wo columns ---
    unary = term_unary_pallas(params["term_mlp"], params["term_emb"], z, word,
                              s_dim=s_dim)

    # --- rules: Pallas kernel, batch-invariant first Linear factored out ---
    rule = rule_pallas(params["rule_w"], params["rule_b"],
                       params["nonterm_emb"], z,
                       s_dim=s_dim, NT=NT, NT_T=NT_T)

    kl = (-0.5 * (lvar - mean ** 2 - jnp.exp(lvar) + 1.0)).sum(axis=1)
    return {"unary": unary, "root": root, "rule": rule, "kl": kl}


# ----------------------------------------------------------------------------
# Pure-JAX reference (mirrors the bf16 casts) for the self-check
# ----------------------------------------------------------------------------
def _reference_terms_rules(params, z, word, cfg):
    f32 = jnp.float32
    s_dim, NT, T = cfg["s_dim"], cfg["NT"], cfg["T"]
    NT_T = NT + T
    B, N = word.shape
    (w1, b1, wa1, ba1, wb1, bb1, wa2, ba2, wb2, bb2, wo, bo) = params["term_mlp"]
    h = ((params["term_emb"] @ w1[:s_dim]).astype(f32) + b1)[None] \
        + (z @ w1[s_dim:]).astype(f32)[:, None, :]                      # (B,T,s)

    def res(hh, wa, ba, wb, bb):
        t = jax.nn.relu(jnp.dot(hh.astype(wa.dtype), wa,
                                preferred_element_type=f32) + ba)
        t = jax.nn.relu(jnp.dot(t.astype(wb.dtype), wb,
                                preferred_element_type=f32) + bb)
        return hh + t

    h = res(h, wa1, ba1, wb1, bb1)
    h = res(h, wa2, ba2, wb2, bb2)
    logits = jnp.dot(h.astype(wo.dtype), wo, preferred_element_type=f32) + bo
    lp = jax.nn.log_softmax(logits, axis=-1)                            # (B,T,V)
    idx = jnp.broadcast_to(word[:, None, :], (B, T, N))
    unary = jnp.swapaxes(jnp.take_along_axis(lp, idx, axis=-1), 1, 2)   # (B,N,T)

    rule_base = (params["nonterm_emb"] @ params["rule_w"][:s_dim]).astype(f32) \
        + params["rule_b"]
    z_rule = (z @ params["rule_w"][s_dim:]).astype(f32)
    rlog = jax.nn.log_softmax(rule_base[None] + z_rule[:, None, :], axis=-1)
    return unary, rlog.reshape(B, NT, NT_T, NT_T)


# ----------------------------------------------------------------------------
if __name__ == "__main__":
    cfg = dict(NT=4, T=8, V=32, s_dim=32, z_dim=16, w_dim=16, h_dim=16)
    B, N = 2, 8

    key = jax.random.PRNGKey(0)
    k_param, k_word = jax.random.split(key)
    params = init_params(k_param, **cfg)

    word = jax.random.randint(k_word, (B, N), 0, cfg["V"], dtype=jnp.int32)
    seq_len = jnp.array([8, 5], dtype=jnp.int32)

    out = jax.jit(lambda p, w, l: forward(p, w, l, cfg, evaluating=True))(
        params, word, seq_len)
    jax.block_until_ready(out)

    NT_T = cfg["NT"] + cfg["T"]
    assert out["unary"].shape == (B, N, cfg["T"])
    assert out["root"].shape == (B, cfg["NT"])
    assert out["rule"].shape == (B, cfg["NT"], NT_T, NT_T)
    assert out["kl"].shape == (B,)
    for v in out.values():
        assert bool(jnp.isfinite(v).all())
    # log-softmax sanity: rows sum to 1 in prob space; log-probs are <= 0.
    assert jnp.allclose(jnp.exp(out["root"]).sum(-1), 1.0, atol=1e-4)
    assert jnp.allclose(jnp.exp(out["rule"]).reshape(B, cfg["NT"], -1).sum(-1),
                        1.0, atol=1e-4)
    assert bool((out["unary"] <= 1e-3).all())

    # Cross-check the fused/factored Pallas paths against a pure-JAX reference.
    mean, _ = _encode(params, word, seq_len, cfg["z_dim"])
    unary_ref, rule_ref = _reference_terms_rules(params, mean, word, cfg)
    assert jnp.allclose(out["unary"], unary_ref, atol=5e-2, rtol=1e-2)
    assert jnp.allclose(out["rule"], rule_ref, atol=1e-3, rtol=1e-4)

    print("KERNEL_OK")
</pallas_src>

<mosaic_0001>
module attributes {stable_mosaic.version = 11 : i64} {
  func.func @_rule_kernel(%arg0: i32, %arg1: memref<4x256xf32, #tpu.memory_space<vmem>>, %arg2: memref<2x1x256xf32, #tpu.memory_space<vmem>>, %arg3: memref<2x4x256xf32, #tpu.memory_space<vmem>>) attributes {dimension_semantics = [#tpu.dimension_semantics<parallel>], iteration_bounds = array<i64: 1>, scalar_prefetch = 0 : i64, scratch_operands = 0 : i64, tpu.core_type = #tpu.core_type<tc>, window_params = [{pipeline_mode = #tpu.pipeline_mode<synchronous>, transform_indices = @transform_0, window_bounds = array<i64: 4, 256>}, {transform_indices = @transform_1, window_bounds = array<i64: 2, 1, 256>}, {transform_indices = @transform_2, window_bounds = array<i64: 2, 4, 256>}]} {
    %c0 = arith.constant 0 : index
    %c0_0 = arith.constant 0 : index
    %0 = vector.load %arg1[%c0, %c0_0] : memref<4x256xf32, #tpu.memory_space<vmem>>, vector<4x256xf32>
    %1 = vector.shape_cast %0 : vector<4x256xf32> to vector<1x4x256xf32>
    %c0_1 = arith.constant 0 : index
    %c0_2 = arith.constant 0 : index
    %c0_3 = arith.constant 0 : index
    %2 = vector.load %arg2[%c0_1, %c0_2, %c0_3] : memref<2x1x256xf32, #tpu.memory_space<vmem>>, vector<2x1x256xf32>
    %3 = vector.broadcast %1 : vector<1x4x256xf32> to vector<2x4x256xf32>
    %4 = vector.broadcast %2 : vector<2x1x256xf32> to vector<2x4x256xf32>
    %5 = arith.addf %3, %4 : vector<2x4x256xf32>
    %cst = arith.constant dense<0xFF800000> : vector<2x4xf32>
    %6 = vector.multi_reduction <maximumf>, %5, %cst [2] : vector<2x4x256xf32> to vector<2x4xf32>
    %7 = vector.shape_cast %6 : vector<2x4xf32> to vector<2x4x1xf32>
    %8 = vector.broadcast %7 : vector<2x4x1xf32> to vector<2x4x256xf32>
    %9 = arith.subf %5, %8 : vector<2x4x256xf32>
    %10 = math.exp %9 : vector<2x4x256xf32>
    %cst_4 = arith.constant dense<0.000000e+00> : vector<2x4xf32>
    %11 = vector.multi_reduction <add>, %10, %cst_4 [2] : vector<2x4x256xf32> to vector<2x4xf32>
    %12 = vector.shape_cast %11 : vector<2x4xf32> to vector<2x4x1xf32>
    %13 = math.log %12 : vector<2x4x1xf32>
    %14 = vector.broadcast %13 : vector<2x4x1xf32> to vector<2x4x256xf32>
    %15 = arith.subf %9, %14 : vector<2x4x256xf32>
    %c0_5 = arith.constant 0 : index
    %c0_6 = arith.constant 0 : index
    %c0_7 = arith.constant 0 : index
    %16 = vector.load %arg3[%c0_5, %c0_6, %c0_7] : memref<2x4x256xf32, #tpu.memory_space<vmem>>, vector<2x4x256xf32>
    tpu.vector_store %arg3[%c0_5, %c0_6, %c0_7], %15 {strides = array<i32>} : memref<2x4x256xf32, #tpu.memory_space<vmem>>, vector<2x4x256xf32>,
    return
  }
  func.func @transform_0(%arg0: i32) -> (i32, i32) {
    %c0_i32 = arith.constant 0 : i32
    %c0_i32_0 = arith.constant 0 : i32
    %c0_i32_1 = arith.constant 0 : i32
    return %c0_i32, %c0_i32_0 : i32, i32
  }
  func.func @transform_1(%arg0: i32) -> (i32, i32, i32) {
    %c0_i32 = arith.constant 0 : i32
    %c0_i32_0 = arith.constant 0 : i32
    %c0_i32_1 = arith.constant 0 : i32
    return %arg0, %c0_i32, %c0_i32_0 : i32, i32, i32
  }
  func.func @transform_2(%arg0: i32) -> (i32, i32, i32) {
    %c0_i32 = arith.constant 0 : i32
    %c0_i32_0 = arith.constant 0 : i32
    %c0_i32_1 = arith.constant 0 : i32
    return %arg0, %c0_i32, %c0_i32_0 : i32, i32, i32
  }
}

module attributes {stable_mosaic.version = 11 : i64} {
  func.func @_term_unary_kernel(%arg0: i32, %arg1: memref<8x32xf32, #tpu.memory_space<vmem>>, %arg2: memref<2x1x32xf32, #tpu.memory_space<vmem>>, %arg3: memref<2x32x128xbf16, #tpu.memory_space<vmem>>, %arg4: memref<2x1x128xf32, #tpu.memory_space<vmem>>, %arg5: memref<32x32xbf16, #tpu.memory_space<vmem>>, %arg6: memref<1x32xf32, #tpu.memory_space<vmem>>, %arg7: memref<32x32xbf16, #tpu.memory_space<vmem>>, %arg8: memref<1x32xf32, #tpu.memory_space<vmem>>, %arg9: memref<32x32xbf16, #tpu.memory_space<vmem>>, %arg10: memref<1x32xf32, #tpu.memory_space<vmem>>, %arg11: memref<32x32xbf16, #tpu.memory_space<vmem>>, %arg12: memref<1x32xf32, #tpu.memory_space<vmem>>, %arg13: memref<32x32xbf16, #tpu.memory_space<vmem>>, %arg14: memref<1x32xf32, #tpu.memory_space<vmem>>, %arg15: memref<2x8x128xf32, #tpu.memory_space<vmem>>) attributes {dimension_semantics = [#tpu.dimension_semantics<parallel>], iteration_bounds = array<i64: 1>, scalar_prefetch = 0 : i64, scratch_operands = 0 : i64, tpu.core_type = #tpu.core_type<tc>, window_params = [{pipeline_mode = #tpu.pipeline_mode<synchronous>, transform_indices = @transform_0, window_bounds = array<i64: 8, 32>}, {transform_indices = @transform_1, window_bounds = array<i64: 2, 1, 32>}, {transform_indices = @transform_2, window_bounds = array<i64: 2, 32, 128>}, {transform_indices = @transform_3, window_bounds = array<i64: 2, 1, 128>}, {pipeline_mode = #tpu.pipeline_mode<synchronous>, transform_indices = @transform_4, window_bounds = array<i64: 32, 32>}, {pipeline_mode = #tpu.pipeline_mode<synchronous>, transform_indices = @transform_5, window_bounds = array<i64: 1, 32>}, {pipeline_mode = #tpu.pipeline_mode<synchronous>, transform_indices = @transform_6, window_bounds = array<i64: 32, 32>}, {pipeline_mode = #tpu.pipeline_mode<synchronous>, transform_indices = @transform_7, window_bounds = array<i64: 1, 32>}, {pipeline_mode = #tpu.pipeline_mode<synchronous>, transform_indices = @transform_8, window_bounds = array<i64: 32, 32>}, {pipeline_mode = #tpu.pipeline_mode<synchronous>, transform_indices = @transform_9, window_bounds = array<i64: 1, 32>}, {pipeline_mode = #tpu.pipeline_mode<synchronous>, transform_indices = @transform_10, window_bounds = array<i64: 32, 32>}, {pipeline_mode = #tpu.pipeline_mode<synchronous>, transform_indices = @transform_11, window_bounds = array<i64: 1, 32>}, {pipeline_mode = #tpu.pipeline_mode<synchronous>, transform_indices = @transform_12, window_bounds = array<i64: 32, 32>}, {pipeline_mode = #tpu.pipeline_mode<synchronous>, transform_indices = @transform_13, window_bounds = array<i64: 1, 32>}, {transform_indices = @transform_14, window_bounds = array<i64: 2, 8, 128>}]} {
    %c0 = arith.constant 0 : index
    %c0_0 = arith.constant 0 : index
    %0 = vector.load %arg1[%c0, %c0_0] : memref<8x32xf32, #tpu.memory_space<vmem>>, vector<8x32xf32>
    %1 = vector.shape_cast %0 : vector<8x32xf32> to vector<1x8x32xf32>
    %c0_1 = arith.constant 0 : index
    %c0_2 = arith.constant 0 : index
    %c0_3 = arith.constant 0 : index
    %2 = vector.load %arg2[%c0_1, %c0_2, %c0_3] : memref<2x1x32xf32, #tpu.memory_space<vmem>>, vector<2x1x32xf32>
    %3 = vector.broadcast %1 : vector<1x8x32xf32> to vector<2x8x32xf32>
    %4 = vector.broadcast %2 : vector<2x1x32xf32> to vector<2x8x32xf32>
    %5 = arith.addf %3, %4 : vector<2x8x32xf32>
    %6 = vector.shape_cast %5 : vector<2x8x32xf32> to vector<16x32xf32>
    %7 = arith.truncf %6 : vector<16x32xf32> to vector<16x32xbf16>
    %c0_4 = arith.constant 0 : index
    %c0_5 = arith.constant 0 : index
    %8 = vector.load %arg5[%c0_4, %c0_5] : memref<32x32xbf16, #tpu.memory_space<vmem>>, vector<32x32xbf16>
    %cst = arith.constant dense<0.000000e+00> : vector<16x32xf32>
    %9 = tpu.matmul %7, %8, %cst {dimension_numbers = #tpu.dot_dimension_numbers<[1], [0], [0], [1], [0, 0, 1, 1], [], []>} : vector<16x32xbf16>, vector<32x32xbf16>, vector<16x32xf32> -> vector<16x32xf32>
    %c0_6 = arith.constant 0 : index
    %c0_7 = arith.constant 0 : index
    %10 = vector.load %arg6[%c0_6, %c0_7] : memref<1x32xf32, #tpu.memory_space<vmem>>, vector<1x32xf32>
    %11 = vector.broadcast %10 : vector<1x32xf32> to vector<16x32xf32>
    %12 = arith.addf %9, %11 : vector<16x32xf32>
    %cst_8 = arith.constant 0.000000e+00 : f32
    %13 = vector.broadcast %cst_8 : f32 to vector<16x32xf32>
    %14 = arith.maximumf %12, %13 : vector<16x32xf32>
    %15 = arith.truncf %14 : vector<16x32xf32> to vector<16x32xbf16>
    %c0_9 = arith.constant 0 : index
    %c0_10 = arith.constant 0 : index
    %16 = vector.load %arg7[%c0_9, %c0_10] : memref<32x32xbf16, #tpu.memory_space<vmem>>, vector<32x32xbf16>
    %cst_11 = arith.constant dense<0.000000e+00> : vector<16x32xf32>
    %17 = tpu.matmul %15, %16, %cst_11 {dimension_numbers = #tpu.dot_dimension_numbers<[1], [0], [0], [1], [0, 0, 1, 1], [], []>} : vector<16x32xbf16>, vector<32x32xbf16>, vector<16x32xf32> -> vector<16x32xf32>
    %c0_12 = arith.constant 0 : index
    %c0_13 = arith.constant 0 : index
    %18 = vector.load %arg8[%c0_12, %c0_13] : memref<1x32xf32, #tpu.memory_space<vmem>>, vector<1x32xf32>
    %19 = vector.broadcast %18 : vector<1x32xf32> to vector<16x32xf32>
    %20 = arith.addf %17, %19 : vector<16x32xf32>
    %cst_14 = arith.constant 0.000000e+00 : f32
    %21 = vector.broadcast %cst_14 : f32 to vector<16x32xf32>
    %22 = arith.maximumf %20, %21 : vector<16x32xf32>
    %23 = arith.addf %6, %22 : vector<16x32xf32>
    %24 = arith.truncf %23 : vector<16x32xf32> to vector<16x32xbf16>
    %c0_15 = arith.constant 0 : index
    %c0_16 = arith.constant 0 : index
    %25 = vector.load %arg9[%c0_15, %c0_16] : memref<32x32xbf16, #tpu.memory_space<vmem>>, vector<32x32xbf16>
    %cst_17 = arith.constant dense<0.000000e+00> : vector<16x32xf32>
    %26 = tpu.matmul %24, %25, %cst_17 {dimension_numbers = #tpu.dot_dimension_numbers<[1], [0], [0], [1], [0, 0, 1, 1], [], []>} : vector<16x32xbf16>, vector<32x32xbf16>, vector<16x32xf32> -> vector<16x32xf32>
    %c0_18 = arith.constant 0 : index
    %c0_19 = arith.constant 0 : index
    %27 = vector.load %arg10[%c0_18, %c0_19] : memref<1x32xf32, #tpu.memory_space<vmem>>, vector<1x32xf32>
    %28 = vector.broadcast %27 : vector<1x32xf32> to vector<16x32xf32>
    %29 = arith.addf %26, %28 : vector<16x32xf32>
    %cst_20 = arith.constant 0.000000e+00 : f32
    %30 = vector.broadcast %cst_20 : f32 to vector<16x32xf32>
    %31 = arith.maximumf %29, %30 : vector<16x32xf32>
    %32 = arith.truncf %31 : vector<16x32xf32> to vector<16x32xbf16>
    %c0_21 = arith.constant 0 : index
    %c0_22 = arith.constant 0 : index
    %33 = vector.load %arg11[%c0_21, %c0_22] : memref<32x32xbf16, #tpu.memory_space<vmem>>, vector<32x32xbf16>
    %cst_23 = arith.constant dense<0.000000e+00> : vector<16x32xf32>
    %34 = tpu.matmul %32, %33, %cst_23 {dimension_numbers = #tpu.dot_dimension_numbers<[1], [0], [0], [1], [0, 0, 1, 1], [], []>} : vector<16x32xbf16>, vector<32x32xbf16>, vector<16x32xf32> -> vector<16x32xf32>
    %c0_24 = arith.constant 0 : index
    %c0_25 = arith.constant 0 : index
    %35 = vector.load %arg12[%c0_24, %c0_25] : memref<1x32xf32, #tpu.memory_space<vmem>>, vector<1x32xf32>
    %36 = vector.broadcast %35 : vector<1x32xf32> to vector<16x32xf32>
    %37 = arith.addf %34, %36 : vector<16x32xf32>
    %cst_26 = arith.constant 0.000000e+00 : f32
    %38 = vector.broadcast %cst_26 : f32 to vector<16x32xf32>
    %39 = arith.maximumf %37, %38 : vector<16x32xf32>
    %40 = arith.addf %23, %39 : vector<16x32xf32>
    %41 = arith.truncf %40 : vector<16x32xf32> to vector<16x32xbf16>
    %c0_27 = arith.constant 0 : index
    %c0_28 = arith.constant 0 : index
    %42 = vector.load %arg13[%c0_27, %c0_28] : memref<32x32xbf16, #tpu.memory_space<vmem>>, vector<32x32xbf16>
    %cst_29 = arith.constant dense<0.000000e+00> : vector<16x32xf32>
    %43 = tpu.matmul %41, %42, %cst_29 {dimension_numbers = #tpu.dot_dimension_numbers<[1], [0], [0], [1], [0, 0, 1, 1], [], []>} : vector<16x32xbf16>, vector<32x32xbf16>, vector<16x32xf32> -> vector<16x32xf32>
    %c0_30 = arith.constant 0 : index
    %c0_31 = arith.constant 0 : index
    %44 = vector.load %arg14[%c0_30, %c0_31] : memref<1x32xf32, #tpu.memory_space<vmem>>, vector<1x32xf32>
    %45 = vector.broadcast %44 : vector<1x32xf32> to vector<16x32xf32>
    %46 = arith.addf %43, %45 : vector<16x32xf32>
    %cst_32 = arith.constant dense<0xFF800000> : vector<16xf32>
    %47 = vector.multi_reduction <maximumf>, %46, %cst_32 [1] : vector<16x32xf32> to vector<16xf32>
    %48 = vector.shape_cast %47 : vector<16xf32> to vector<16x1xf32>
    %49 = vector.broadcast %48 : vector<16x1xf32> to vector<16x32xf32>
    %50 = arith.subf %46, %49 : vector<16x32xf32>
    %51 = math.exp %50 : vector<16x32xf32>
    %cst_33 = arith.constant dense<0.000000e+00> : vector<16xf32>
    %52 = vector.multi_reduction <add>, %51, %cst_33 [1] : vector<16x32xf32> to vector<16xf32>
    %53 = vector.shape_cast %52 : vector<16xf32> to vector<16x1xf32>
    %54 = math.log %53 : vector<16x1xf32>
    %55 = arith.addf %48, %54 : vector<16x1xf32>
    %56 = vector.shape_cast %55 : vector<16x1xf32> to vector<2x8x1xf32>
    %57 = vector.shape_cast %41 : vector<16x32xbf16> to vector<2x8x32xbf16>
    %c0_34 = arith.constant 0 : index
    %c0_35 = arith.constant 0 : index
    %c0_36 = arith.constant 0 : index
    %58 = vector.load %arg3[%c0_34, %c0_35, %c0_36] : memref<2x32x128xbf16, #tpu.memory_space<vmem>>, vector<2x32x128xbf16>
    %cst_37 = arith.constant dense<0.000000e+00> : vector<2x8x128xf32>
    %59 = tpu.matmul %57, %58, %cst_37 {dimension_numbers = #tpu.dot_dimension_numbers<[2], [1], [1], [2], [0, 0, 0, 1, 1, 2], [0], [0]>} : vector<2x8x32xbf16>, vector<2x32x128xbf16>, vector<2x8x128xf32> -> vector<2x8x128xf32>
    %c0_38 = arith.constant 0 : index
    %c0_39 = arith.constant 0 : index
    %c0_40 = arith.constant 0 : index
    %60 = vector.load %arg4[%c0_38, %c0_39, %c0_40] : memref<2x1x128xf32, #tpu.memory_space<vmem>>, vector<2x1x128xf32>
    %61 = vector.broadcast %60 : vector<2x1x128xf32> to vector<2x8x128xf32>
    %62 = arith.addf %59, %61 : vector<2x8x128xf32>
    %63 = vector.broadcast %56 : vector<2x8x1xf32> to vector<2x8x128xf32>
    %64 = arith.subf %62, %63 : vector<2x8x128xf32>
    %c0_41 = arith.constant 0 : index
    %c0_42 = arith.constant 0 : index
    %c0_43 = arith.constant 0 : index
    %65 = vector.load %arg15[%c0_41, %c0_42, %c0_43] : memref<2x8x128xf32, #tpu.memory_space<vmem>>, vector<2x8x128xf32>
    tpu.vector_store %arg15[%c0_41, %c0_42, %c0_43], %64 {strides = array<i32>} : memref<2x8x128xf32, #tpu.memory_space<vmem>>, vector<2x8x128xf32>,
    return
  }
  func.func @transform_0(%arg0: i32) -> (i32, i32) {
    %c0_i32 = arith.constant 0 : i32
    %c0_i32_0 = arith.constant 0 : i32
    %c0_i32_1 = arith.constant 0 : i32
    return %c0_i32, %c0_i32_0 : i32, i32
  }
  func.func @transform_1(%arg0: i32) -> (i32, i32, i32) {
    %c0_i32 = arith.constant 0 : i32
    %c0_i32_0 = arith.constant 0 : i32
    %c0_i32_1 = arith.constant 0 : i32
    return %arg0, %c0_i32, %c0_i32_0 : i32, i32, i32
  }
  func.func @transform_2(%arg0: i32) -> (i32, i32, i32) {
    %c0_i32 = arith.constant 0 : i32
    %c0_i32_0 = arith.constant 0 : i32
    %c0_i32_1 = arith.constant 0 : i32
    return %arg0, %c0_i32, %c0_i32_0 : i32, i32, i32
  }
  func.func @transform_3(%arg0: i32) -> (i32, i32, i32) {
    %c0_i32 = arith.constant 0 : i32
    %c0_i32_0 = arith.constant 0 : i32
    %c0_i32_1 = arith.constant 0 : i32
    return %arg0, %c0_i32, %c0_i32_0 : i32, i32, i32
  }
  func.func @transform_4(%arg0: i32) -> (i32, i32) {
    %c0_i32 = arith.constant 0 : i32
    %c0_i32_0 = arith.constant 0 : i32
    %c0_i32_1 = arith.constant 0 : i32
    return %c0_i32, %c0_i32_0 : i32, i32
  }
  func.func @transform_5(%arg0: i32) -> (i32, i32) {
    %c0_i32 = arith.constant 0 : i32
    %c0_i32_0 = arith.constant 0 : i32
    %c0_i32_1 = arith.constant 0 : i32
    return %c0_i32, %c0_i32_0 : i32, i32
  }
  func.func @transform_6(%arg0: i32) -> (i32, i32) {
    %c0_i32 = arith.constant 0 : i32
    %c0_i32_0 = arith.constant 0 : i32
    %c0_i32_1 = arith.constant 0 : i32
    return %c0_i32, %c0_i32_0 : i32, i32
  }
  func.func @transform_7(%arg0: i32) -> (i32, i32) {
    %c0_i32 = arith.constant 0 : i32
    %c0_i32_0 = arith.constant 0 : i32
    %c0_i32_1 = arith.constant 0 : i32
    return %c0_i32, %c0_i32_0 : i32, i32
  }
  func.func @transform_8(%arg0: i32) -> (i32, i32) {
    %c0_i32 = arith.constant 0 : i32
    %c0_i32_0 = arith.constant 0 : i32
    %c0_i32_1 = arith.constant 0 : i32
    return %c0_i32, %c0_i32_0 : i32, i32
  }
  func.func @transform_9(%arg0: i32) -> (i32, i32) {
    %c0_i32 = arith.constant 0 : i32
    %c0_i32_0 = arith.constant 0 : i32
    %c0_i32_1 = arith.constant 0 : i32
    return %c0_i32, %c0_i32_0 : i32, i32
  }
  func.func @transform_10(%arg0: i32) -> (i32, i32) {
    %c0_i32 = arith.constant 0 : i32
    %c0_i32_0 = arith.constant 0 : i32
    %c0_i32_1 = arith.constant 0 : i32
    return %c0_i32, %c0_i32_0 : i32, i32
  }
  func.func @transform_11(%arg0: i32) -> (i32, i32) {
    %c0_i32 = arith.constant 0 : i32
    %c0_i32_0 = arith.constant 0 : i32
    %c0_i32_1 = arith.constant 0 : i32
    return %c0_i32, %c0_i32_0 : i32, i32
  }
  func.func @transform_12(%arg0: i32) -> (i32, i32) {
    %c0_i32 = arith.constant 0 : i32
    %c0_i32_0 = arith.constant 0 : i32
    %c0_i32_1 = arith.constant 0 : i32
    return %c0_i32, %c0_i32_0 : i32, i32
  }
  func.func @transform_13(%arg0: i32) -> (i32, i32) {
    %c0_i32 = arith.constant 0 : i32
    %c0_i32_0 = arith.constant 0 : i32
    %c0_i32_1 = arith.constant 0 : i32
    return %c0_i32, %c0_i32_0 : i32, i32
  }
  func.func @transform_14(%arg0: i32) -> (i32, i32, i32) {
    %c0_i32 = arith.constant 0 : i32
    %c0_i32_0 = arith.constant 0 : i32
    %c0_i32_1 = arith.constant 0 : i32
    return %arg0, %c0_i32, %c0_i32_0 : i32, i32, i32
  }
}

</mosaic_0001>

<llo_original>
// kernel: custom-call.2
$region0: #{custom-call.2}
  %s0 = inlined_call_operand.vmem [shape: bf16[2,16], index: 0, kind: output, shape index: {}]

// kernel: custom-call.3
$region0: #{custom-call.3}
  %s0 = inlined_call_operand.vmem [shape: f32[2,16], index: 0, kind: output, shape index: {}]

// kernel: _lambda_.3
$region0: #{_lambda_.3}
  #allocation0 [shape = 'u32[]', space=smem, size = 0x4, offset = 0x4, fixed_abs, tag = 'smem constant byte address 0x4 - core index']
  #allocation1 [shape = 'u32[144,128]{1,0:T(1,128)}', space=vmem, size = 0x12000, scoped, tag = 'internal scratch']
  %s0 = inlined_call_operand.vmem [shape: f32[4,256], index: 0, kind: input, shape index: {}]
  %s1 = inlined_call_operand.vmem [shape: f32[2,1,256], index: 1, kind: input, shape index: {}]
  %s2 = inlined_call_operand.vmem [shape: f32[2,4,256], index: 2, kind: output, shape index: {}]
  %s3 = sld [smem:[#allocation0]]
  $region18: #{_lambda_.3} parent=0
    _
  %s5 = ssub.s32 1, %s3
  %s6 = scalar_select 0, %s5, %s3
  // Predicated region
  $region2: #{_lambda_.3} parent=0 // pred_check
    _
  $region3: #{_lambda_.3} parent=0 // pred_check_branch
    %8 = sbr.rel (0) target = $region5
  $region4: #{_lambda_.3} parent=0 // pred_region
    _
  $region5: #{_lambda_.3} parent=0 // pred_fallthru
    _
  // Predicated region
  $region6: #{_lambda_.3} parent=0 // pred_check
    _
  $region7: #{_lambda_.3} parent=0 // pred_check_branch
    %10 = sbr.rel (0) target = $region9
  $region8: #{_lambda_.3} parent=0 // pred_region
    _
  $region9: #{_lambda_.3} parent=0 // pred_fallthru
    _
  %v11 = vld [vmem:[%s0] sm:$0xff]
  %v12 = vld [vmem:[%s1] sm:$0x3]
  %v13 = vld [vmem:[%s1 + $0x2] sm:$0x3]
  %v16 = vlaneseq
  %v17 = vshrl.u32 %v16, 7
  %v18 = vsub.s32 0, %v17
  %v19 = vrot.slane %v12, %v18
  %v20 = vlaneseq
  %v21 = vshrl.u32 %v20, 7
  %v22 = vsub.s32 1, %v21
  %v23 = vrot.slane %v12, %v22
  %v24 = vlaneseq
  %v25 = vshrl.u32 %v24, 7
  %v26 = vsub.s32 0, %v25
  %v27 = vrot.slane %v13, %v26
  %v28 = vlaneseq
  %v29 = vshrl.u32 %v28, 7
  %v30 = vsub.s32 1, %v29
  %v31 = vrot.slane %v13, %v30
  %v32 = vcombine.low %v19, %v23
  %v33 = vcombine.low %v27, %v31
  %v36 = vadd.f32 %v11, %v32
  %v37 = vadd.f32 %v11, %v33
  %v40 = vcombine.high %v36, %v36
  %v41 = vcombine.high %v37, %v37
  %vm44 = vcmask 1043456
  %v45 = vsel %vm44, %v36, -inf
  %v46 = vsel %vm44, %v40, -inf
  %v47 = vmax.f32 %v45, %v46
  %48 = vmax.xlane.f32.xlu0 %v47
  %v49 = vpop.xlane.xlu0 %48
  %v50 = vsel %vm44, %v37, -inf
  %v51 = vsel %vm44, %v41, -inf
  %v52 = vmax.f32 %v50, %v51
  %53 = vmax.xlane.f32.xlu0 %v52
  %v54 = vpop.xlane.xlu0 %53
  %v58 = vunpack.c.l.s4 839922192
  %v59 = vunpack.c.0.s8 %v58
  %v60 = vlaneseq
  %v61 = vshrl.u32 %v60, 7
  %v62 = vsub.s32 %v59, %v61
  %v63 = vrot.slane %v49, %v62
  %v65 = vunpack.c.l.s4 839922192
  %v66 = vunpack.c.0.s8 %v65
  %v67 = vlaneseq
  %v68 = vshrl.u32 %v67, 7
  %v69 = vsub.s32 %v66, %v68
  %v70 = vrot.slane %v54, %v69
  %v73 = vsub.f32 %v36, %v63
  %v74 = vsub.f32 %v37, %v70
  %v75 = vmul.f32 %v73, 1.442695
  %v76 = vpow.pop %v75
  %v77 = vmul.f32 %v74, 1.442695
  %v78 = vpow.pop %v77
  %v81 = vcombine.high %v76, %v76
  %v82 = vcombine.high %v78, %v78
  %v85 = vsel %vm44, %v76, 0.0
  %v86 = vsel %vm44, %v81, 0.0
  %v87 = vadd.f32 %v85, %v86
  %88 = vadd.xlane.f32.xlu0 %v87
  %v89 = vpop.xlane.xlu0 %88
  %v90 = vsel %vm44, %v78, 0.0
  %v91 = vsel %vm44, %v82, 0.0
  %v92 = vadd.f32 %v90, %v91
  %93 = vadd.xlane.f32.xlu0 %v92
  %v94 = vpop.xlane.xlu0 %93
  %v95 = vlog2.pop %v89
  %v96 = vmul.f32 %v95, 0.6931472
  %v97 = vlog2.pop %v94
  %v98 = vmul.f32 %v97, 0.6931472
  %v102 = vunpack.c.l.s4 839922192
  %v103 = vunpack.c.0.s8 %v102
  %v104 = vlaneseq
  %v105 = vshrl.u32 %v104, 7
  %v106 = vsub.s32 %v103, %v105
  %v107 = vrot.slane %v96, %v106
  %v109 = vunpack.c.l.s4 839922192
  %v110 = vunpack.c.0.s8 %v109
  %v111 = vlaneseq
  %v112 = vshrl.u32 %v111, 7
  %v113 = vsub.s32 %v110, %v112
  %v114 = vrot.slane %v98, %v113
  %v117 = vsub.f32 %v73, %v107
  %v118 = vsub.f32 %v74, %v114
  %119 = vst [vmem:[%s2] sm:$0xff] %v117
  %120 = vst [vmem:[%s2 + $0x8] sm:$0xff] %v118
  // Predicated region
  $region10: #{_lambda_.3} parent=0 // pred_check
    _
  $region11: #{_lambda_.3} parent=0 // pred_check_branch
    %122 = sbr.rel (0) target = $region13
  $region12: #{_lambda_.3} parent=0 // pred_region
    _
  $region13: #{_lambda_.3} parent=0 // pred_fallthru
    _
  // Predicated region
  $region14: #{_lambda_.3} parent=0 // pred_check
    _
  $region15: #{_lambda_.3} parent=0 // pred_check_branch
    %124 = sbr.rel (0) target = $region17
  $region16: #{_lambda_.3} parent=0 // pred_region
    _
  $region17: #{_lambda_.3} parent=0 // pred_fallthru
    _

// kernel: _lambda_.2
$region0: #{_lambda_.2}
  #allocation0 [shape = 'u32[]', space=smem, size = 0x4, offset = 0x4, fixed_abs, tag = 'smem constant byte address 0x4 - core index']
  #allocation1 [shape = 'u32[144,128]{1,0:T(1,128)}', space=vmem, size = 0x12000, scoped, tag = 'internal scratch']
  %s0 = inlined_call_operand.vmem [shape: f32[8,32], index: 0, kind: input, shape index: {}]
  %s1 = inlined_call_operand.vmem [shape: f32[2,1,32], index: 1, kind: input, shape index: {}]
  %s2 = inlined_call_operand.vmem [shape: bf16[2,32,128], index: 2, kind: input, shape index: {}]
  %s3 = inlined_call_operand.vmem [shape: f32[2,1,128], index: 3, kind: input, shape index: {}]
  %s4 = inlined_call_operand.vmem [shape: bf16[32,32], index: 4, kind: input, shape index: {}]
  %s5 = inlined_call_operand.vmem [shape: f32[1,32], index: 5, kind: input, shape index: {}]
  %s6 = inlined_call_operand.vmem [shape: bf16[32,32], index: 6, kind: input, shape index: {}]
  %s7 = inlined_call_operand.vmem [shape: f32[1,32], index: 7, kind: input, shape index: {}]
  %s8 = inlined_call_operand.vmem [shape: bf16[32,32], index: 8, kind: input, shape index: {}]
  %s9 = inlined_call_operand.vmem [shape: f32[1,32], index: 9, kind: input, shape index: {}]
  %s10 = inlined_call_operand.vmem [shape: bf16[32,32], index: 10, kind: input, shape index: {}]
  %s11 = inlined_call_operand.vmem [shape: f32[1,32], index: 11, kind: input, shape index: {}]
  %s12 = inlined_call_operand.vmem [shape: bf16[32,32], index: 12, kind: input, shape index: {}]
  %s13 = inlined_call_operand.vmem [shape: f32[1,32], index: 13, kind: input, shape index: {}]
  %s14 = inlined_call_operand.vmem [shape: f32[2,8,128], index: 14, kind: output, shape index: {}]
  %s15 = sld [smem:[#allocation0]]
  $region66: #{_lambda_.2} parent=0
    _
  %s17 = ssub.s32 1, %s15
  %s18 = scalar_select 0, %s17, %s15
  // Predicated region
  $region2: #{_lambda_.2} parent=0 // pred_check
    _
  $region3: #{_lambda_.2} parent=0 // pred_check_branch
    %20 = sbr.rel (0) target = $region5
  $region4: #{_lambda_.2} parent=0 // pred_region
    _
  $region5: #{_lambda_.2} parent=0 // pred_fallthru
    _
  // Predicated region
  $region6: #{_lambda_.2} parent=0 // pred_check
    _
  $region7: #{_lambda_.2} parent=0 // pred_check_branch
    %22 = sbr.rel (0) target = $region9
  $region8: #{_lambda_.2} parent=0 // pred_region
    _
  $region9: #{_lambda_.2} parent=0 // pred_fallthru
    _
  // Predicated region
  $region10: #{_lambda_.2} parent=0 // pred_check
    _
  $region11: #{_lambda_.2} parent=0 // pred_check_branch
    %24 = sbr.rel (0) target = $region13
  $region12: #{_lambda_.2} parent=0 // pred_region
    _
  $region13: #{_lambda_.2} parent=0 // pred_fallthru
    _
  // Predicated region
  $region14: #{_lambda_.2} parent=0 // pred_check
    _
  $region15: #{_lambda_.2} parent=0 // pred_check_branch
    %26 = sbr.rel (0) target = $region17
  $region16: #{_lambda_.2} parent=0 // pred_region
    _
  $region17: #{_lambda_.2} parent=0 // pred_fallthru
    _
  // Predicated region
  $region18: #{_lambda_.2} parent=0 // pred_check
    _
  $region19: #{_lambda_.2} parent=0 // pred_check_branch
    %28 = sbr.rel (0) target = $region21
  $region20: #{_lambda_.2} parent=0 // pred_region
    _
  $region21: #{_lambda_.2} parent=0 // pred_fallthru
    _
  // Predicated region
  $region22: #{_lambda_.2} parent=0 // pred_check
    _
  $region23: #{_lambda_.2} parent=0 // pred_check_branch
    %30 = sbr.rel (0) target = $region25
  $region24: #{_lambda_.2} parent=0 // pred_region
    _
  $region25: #{_lambda_.2} parent=0 // pred_fallthru
    _
  // Predicated region
  $region26: #{_lambda_.2} parent=0 // pred_check
    _
  $region27: #{_lambda_.2} parent=0 // pred_check_branch
    %32 = sbr.rel (0) target = $region29
  $region28: #{_lambda_.2} parent=0 // pred_region
    _
  $region29: #{_lambda_.2} parent=0 // pred_fallthru
    _
  // Predicated region
  $region30: #{_lambda_.2} parent=0 // pred_check
    _
  $region31: #{_lambda_.2} parent=0 // pred_check_branch
    %34 = sbr.rel (0) target = $region33
  $region32: #{_lambda_.2} parent=0 // pred_region
    _
  $region33: #{_lambda_.2} parent=0 // pred_fallthru
    _
  // Predicated region
  $region34: #{_lambda_.2} parent=0 // pred_check
    _
  $region35: #{_lambda_.2} parent=0 // pred_check_branch
    %36 = sbr.rel (0) target = $region37
  $region36: #{_lambda_.2} parent=0 // pred_region
    _
  $region37: #{_lambda_.2} parent=0 // pred_fallthru
    _
  // Predicated region
  $region38: #{_lambda_.2} parent=0 // pred_check
    _
  $region39: #{_lambda_.2} parent=0 // pred_check_branch
    %38 = sbr.rel (0) target = $region41
  $region40: #{_lambda_.2} parent=0 // pred_region
    _
  $region41: #{_lambda_.2} parent=0 // pred_fallthru
    _
  // Predicated region
  $region42: #{_lambda_.2} parent=0 // pred_check
    _
  $region43: #{_lambda_.2} parent=0 // pred_check_branch
    %40 = sbr.rel (0) target = $region45
  $region44: #{_lambda_.2} parent=0 // pred_region
    _
  $region45: #{_lambda_.2} parent=0 // pred_fallthru
    _
  // Predicated region
  $region46: #{_lambda_.2} parent=0 // pred_check
    _
  $region47: #{_lambda_.2} parent=0 // pred_check_branch
    %42 = sbr.rel (0) target = $region49
  $region48: #{_lambda_.2} parent=0 // pred_region
    _
  $region49: #{_lambda_.2} parent=0 // pred_fallthru
    _
  // Predicated region
  $region50: #{_lambda_.2} parent=0 // pred_check
    _
  $region51: #{_lambda_.2} parent=0 // pred_check_branch
    %44 = sbr.rel (0) target = $region53
  $region52: #{_lambda_.2} parent=0 // pred_region
    _
  $region53: #{_lambda_.2} parent=0 // pred_fallthru
    _
  // Predicated region
  $region54: #{_lambda_.2} parent=0 // pred_check
    _
  $region55: #{_lambda_.2} parent=0 // pred_check_branch
    %46 = sbr.rel (0) target = $region57
  $region56: #{_lambda_.2} parent=0 // pred_region
    _
  $region57: #{_lambda_.2} parent=0 // pred_fallthru
    _
  %v48 = vld [vmem:[%s0] sm:$0xff]
  %v49 = vld [vmem:[%s1] sm:$0x1]
  %v50 = vld [vmem:[%s1 + $0x1] sm:$0x1]
  %v53 = vlaneseq
  %v54 = vshrl.u32 %v53, 7
  %v55 = vsub.s32 0, %v54
  %v56 = vrot.slane %v49, %v55
  %v57 = vlaneseq
  %v58 = vshrl.u32 %v57, 7
  %v59 = vsub.s32 0, %v58
  %v60 = vrot.slane %v50, %v59
  %v63 = vadd.f32 %v48, %v56
  %v64 = vadd.f32 %v48, %v60
  %v65 = vpack.c.bf16 %v64, %v63
  %v66 = vld [vmem:[%s4] sm:$0xf]
  %v67 = vld [vmem:[%s4 + $0x4] sm:$0xf]
  %v68 = vld [vmem:[%s4 + $0x8] sm:$0xf]
  %v69 = vld [vmem:[%s4 + $0xc] sm:$0xf]
  %v70 = vld [vmem:[%s5] sm:$0x1]
  %v72 = vlaneseq
  %v73 = vshrl.u32 %v72, 7
  %v74 = vsub.s32 0, %v73
  %v75 = vrot.slane %v70, %v74
  %v81 = vunpack.c.l.b16 %v66
  %v82 = vunpack.c.l.b16 %v67
  %v83 = vunpack.c.l.b16 %v68
  %v84 = vunpack.c.l.b16 %v69
  %v85 = vpack.c.b16 %v82, %v81
  %v86 = vpack.c.b16 %v84, %v83
  %vm89 = vcmask 261120
  %v91 = vsel %vm89, %v65, 0
  %93 = vmatprep.subr.bf16.mxu0 0
  %94 = vmatpush1.bf16.msra.mxu0 0
  %95 = vmatprep.subr.bf16.mxu0 0
  %96 = vmatpush1.bf16.msra.mxu0 0
  %97 = vmatprep.subr.bf16.mxu0 0
  %98 = vmatpush1.bf16.msra.mxu0 0
  %99 = vmatprep.subr.bf16.mxu0 0
  %100 = vmatpush1.bf16.msra.mxu0 0
  %101 = vmatprep.subr.bf16.mxu0 0
  %102 = vmatpush1.bf16.msra.mxu0 0
  %103 = vmatprep.subr.bf16.mxu0 0
  %104 = vmatpush1.bf16.msra.mxu0 0
  %105 = vmatprep.subr.bf16.mxu0 0
  %106 = vmatpush1.bf16.msra.mxu0 %v86
  %107 = vmatprep.subr.bf16.mxu0 0
  %108 = vmatpush1.bf16.msra.mxu0 %v85
  %109 = vmatprep.subr.bf16.mxu0 0
  %110 = vmatpush2.bf16.msra.mxu0 0
  %111 = vmatprep.subr.bf16.mxu0 0
  %112 = vmatpush2.bf16.msra.mxu0 0
  %113 = vmatprep.subr.bf16.mxu0 0
  %114 = vmatpush2.bf16.msra.mxu0 0
  %115 = vmatprep.subr.bf16.mxu0 0
  %116 = vmatpush2.bf16.msra.mxu0 0
  %117 = vmatprep.subr.bf16.mxu0 0
  %118 = vmatpush2.bf16.msra.mxu0 0
  %119 = vmatprep.subr.bf16.mxu0 0
  %120 = vmatpush2.bf16.msra.mxu0 0
  %121 = vmatprep.subr.bf16.mxu0 0
  %122 = vmatpush2.bf16.msra.mxu0 0
  %123 = vmatprep.subr.bf16.mxu0 0
  %124 = vmatpush2.bf16.msra.mxu0 0
  %125 = vmatprep.mubr.bf16.mxu0 0
  %126 = vmatmul.mubr.bf16.gmra.mxu0 %v91
  %v127 = vpop.f32.mrf.mxu0
  %v128 = vadd.f32 %v75, %v127
  %v129 = vpop.f32.mrf.mxu0
  %v130 = vpop.f32.mrf.mxu0
  %v131 = vadd.f32 %v75, %v130
  %v132 = vpop.f32.mrf.mxu0
  %133 = vdwg.mxu0
  %v134 = vmax.f32 %v128, 0.0
  %v135 = vmax.f32 %v131, 0.0
  %v136 = vpack.c.bf16 %v135, %v134
  %v137 = vld [vmem:[%s6] sm:$0xf]
  %v138 = vld [vmem:[%s6 + $0x4] sm:$0xf]
  %v139 = vld [vmem:[%s6 + $0x8] sm:$0xf]
  %v140 = vld [vmem:[%s6 + $0xc] sm:$0xf]
  %v141 = vld [vmem:[%s7] sm:$0x1]
  %v143 = vlaneseq
  %v144 = vshrl.u32 %v143, 7
  %v145 = vsub.s32 0, %v144
  %v146 = vrot.slane %v141, %v145
  %v152 = vunpack.c.l.b16 %v137
  %v153 = vunpack.c.l.b16 %v138
  %v154 = vunpack.c.l.b16 %v139
  %v155 = vunpack.c.l.b16 %v140
  %v156 = vpack.c.b16 %v153, %v152
  %v157 = vpack.c.b16 %v155, %v154
  %v161 = vsel %vm89, %v136, 0
  %163 = vmatprep.subr.bf16.mxu0 0
  %164 = vmatpush1.bf16.msra.mxu0 0
  %165 = vmatprep.subr.bf16.mxu0 0
  %166 = vmatpush1.bf16.msra.mxu0 0
  %167 = vmatprep.subr.bf16.mxu0 0
  %168 = vmatpush1.bf16.msra.mxu0 0
  %169 = vmatprep.subr.bf16.mxu0 0
  %170 = vmatpush1.bf16.msra.mxu0 0
  %171 = vmatprep.subr.bf16.mxu0 0
  %172 = vmatpush1.bf16.msra.mxu0 0
  %173 = vmatprep.subr.bf16.mxu0 0
  %174 = vmatpush1.bf16.msra.mxu0 0
  %175 = vmatprep.subr.bf16.mxu0 0
  %176 = vmatpush1.bf16.msra.mxu0 %v157
  %177 = vmatprep.subr.bf16.mxu0 0
  %178 = vmatpush1.bf16.msra.mxu0 %v156
  %179 = vmatprep.subr.bf16.mxu0 0
  %180 = vmatpush2.bf16.msra.mxu0 0
  %181 = vmatprep.subr.bf16.mxu0 0
  %182 = vmatpush2.bf16.msra.mxu0 0
  %183 = vmatprep.subr.bf16.mxu0 0
  %184 = vmatpush2.bf16.msra.mxu0 0
  %185 = vmatprep.subr.bf16.mxu0 0
  %186 = vmatpush2.bf16.msra.mxu0 0
  %187 = vmatprep.subr.bf16.mxu0 0
  %188 = vmatpush2.bf16.msra.mxu0 0
  %189 = vmatprep.subr.bf16.mxu0 0
  %190 = vmatpush2.bf16.msra.mxu0 0
  %191 = vmatprep.subr.bf16.mxu0 0
  %192 = vmatpush2.bf16.msra.mxu0 0
  %193 = vmatprep.subr.bf16.mxu0 0
  %194 = vmatpush2.bf16.msra.mxu0 0
  %195 = vmatprep.mubr.bf16.mxu0 0
  %196 = vmatmul.mubr.bf16.gmra.mxu0 %v161
  %v197 = vpop.f32.mrf.mxu0
  %v198 = vadd.f32 %v146, %v197
  %v199 = vpop.f32.mrf.mxu0
  %v200 = vpop.f32.mrf.mxu0
  %v201 = vadd.f32 %v146, %v200
  %v202 = vpop.f32.mrf.mxu0
  %203 = vdwg.mxu0
  %v204 = vmax.f32 %v198, 0.0
  %v205 = vmax.f32 %v201, 0.0
  %v206 = vadd.f32 %v63, %v204
  %v207 = vadd.f32 %v64, %v205
  %v208 = vpack.c.bf16 %v207, %v206
  %v209 = vld [vmem:[%s8] sm:$0xf]
  %v210 = vld [vmem:[%s8 + $0x4] sm:$0xf]
  %v211 = vld [vmem:[%s8 + $0x8] sm:$0xf]
  %v212 = vld [vmem:[%s8 + $0xc] sm:$0xf]
  %v213 = vld [vmem:[%s9] sm:$0x1]
  %v215 = vlaneseq
  %v216 = vshrl.u32 %v215, 7
  %v217 = vsub.s32 0, %v216
  %v218 = vrot.slane %v213, %v217
  %v224 = vunpack.c.l.b16 %v209
  %v225 = vunpack.c.l.b16 %v210
  %v226 = vunpack.c.l.b16 %v211
  %v227 = vunpack.c.l.b16 %v212
  %v228 = vpack.c.b16 %v225, %v224
  %v229 = vpack.c.b16 %v227, %v226
  %v233 = vsel %vm89, %v208, 0
  %235 = vmatprep.subr.bf16.mxu0 0
  %236 = vmatpush1.bf16.msra.mxu0 0
  %237 = vmatprep.subr.bf16.mxu0 0
  %238 = vmatpush1.bf16.msra.mxu0 0
  %239 = vmatprep.subr.bf16.mxu0 0
  %240 = vmatpush1.bf16.msra.mxu0 0
  %241 = vmatprep.subr.bf16.mxu0 0
  %242 = vmatpush1.bf16.msra.mxu0 0
  %243 = vmatprep.subr.bf16.mxu0 0
  %244 = vmatpush1.bf16.msra.mxu0 0
  %245 = vmatprep.subr.bf16.mxu0 0
  %246 = vmatpush1.bf16.msra.mxu0 0
  %247 = vmatprep.subr.bf16.mxu0 0
  %248 = vmatpush1.bf16.msra.mxu0 %v229
  %249 = vmatprep.subr.bf16.mxu0 0
  %250 = vmatpush1.bf16.msra.mxu0 %v228
  %251 = vmatprep.subr.bf16.mxu0 0
  %252 = vmatpush2.bf16.msra.mxu0 0
  %253 = vmatprep.subr.bf16.mxu0 0
  %254 = vmatpush2.bf16.msra.mxu0 0
  %255 = vmatprep.subr.bf16.mxu0 0
  %256 = vmatpush2.bf16.msra.mxu0 0
  %257 = vmatprep.subr.bf16.mxu0 0
  %258 = vmatpush2.bf16.msra.mxu0 0
  %259 = vmatprep.subr.bf16.mxu0 0
  %260 = vmatpush2.bf16.msra.mxu0 0
  %261 = vmatprep.subr.bf16.mxu0 0
  %262 = vmatpush2.bf16.msra.mxu0 0
  %263 = vmatprep.subr.bf16.mxu0 0
  %264 = vmatpush2.bf16.msra.mxu0 0
  %265 = vmatprep.subr.bf16.mxu0 0
  %266 = vmatpush2.bf16.msra.mxu0 0
  %267 = vmatprep.mubr.bf16.mxu0 0
  %268 = vmatmul.mubr.bf16.gmra.mxu0 %v233
  %v269 = vpop.f32.mrf.mxu0
  %v270 = vadd.f32 %v218, %v269
  %v271 = vpop.f32.mrf.mxu0
  %v272 = vpop.f32.mrf.mxu0
  %v273 = vadd.f32 %v218, %v272
  %v274 = vpop.f32.mrf.mxu0
  %275 = vdwg.mxu0
  %v276 = vmax.f32 %v270, 0.0
  %v277 = vmax.f32 %v273, 0.0
  %v278 = vpack.c.bf16 %v277, %v276
  %v279 = vld [vmem:[%s10] sm:$0xf]
  %v280 = vld [vmem:[%s10 + $0x4] sm:$0xf]
  %v281 = vld [vmem:[%s10 + $0x8] sm:$0xf]
  %v282 = vld [vmem:[%s10 + $0xc] sm:$0xf]
  %v283 = vld [vmem:[%s11] sm:$0x1]
  %v285 = vlaneseq
  %v286 = vshrl.u32 %v285, 7
  %v287 = vsub.s32 0, %v286
  %v288 = vrot.slane %v283, %v287
  %v294 = vunpack.c.l.b16 %v279
  %v295 = vunpack.c.l.b16 %v280
  %v296 = vunpack.c.l.b16 %v281
  %v297 = vunpack.c.l.b16 %v282
  %v298 = vpack.c.b16 %v295, %v294
  %v299 = vpack.c.b16 %v297, %v296
  %v303 = vsel %vm89, %v278, 0
  %305 = vmatprep.subr.bf16.mxu0 0
  %306 = vmatpush1.bf16.msra.mxu0 0
  %307 = vmatprep.subr.bf16.mxu0 0
  %308 = vmatpush1.bf16.msra.mxu0 0
  %309 = vmatprep.subr.bf16.mxu0 0
  %310 = vmatpush1.bf16.msra.mxu0 0
  %311 = vmatprep.subr.bf16.mxu0 0
  %312 = vmatpush1.bf16.msra.mxu0 0
  %313 = vmatprep.subr.bf16.mxu0 0
  %314 = vmatpush1.bf16.msra.mxu0 0
  %315 = vmatprep.subr.bf16.mxu0 0
  %316 = vmatpush1.bf16.msra.mxu0 0
  %317 = vmatprep.subr.bf16.mxu0 0
  %318 = vmatpush1.bf16.msra.mxu0 %v299
  %319 = vmatprep.subr.bf16.mxu0 0
  %320 = vmatpush1.bf16.msra.mxu0 %v298
  %321 = vmatprep.subr.bf16.mxu0 0
  %322 = vmatpush2.bf16.msra.mxu0 0
  %323 = vmatprep.subr.bf16.mxu0 0
  %324 = vmatpush2.bf16.msra.mxu0 0
  %325 = vmatprep.subr.bf16.mxu0 0
  %326 = vmatpush2.bf16.msra.mxu0 0
  %327 = vmatprep.subr.bf16.mxu0 0
  %328 = vmatpush2.bf16.msra.mxu0 0
  %329 = vmatprep.subr.bf16.mxu0 0
  %330 = vmatpush2.bf16.msra.mxu0 0
  %331 = vmatprep.subr.bf16.mxu0 0
  %332 = vmatpush2.bf16.msra.mxu0 0
  %333 = vmatprep.subr.bf16.mxu0 0
  %334 = vmatpush2.bf16.msra.mxu0 0
  %335 = vmatprep.subr.bf16.mxu0 0
  %336 = vmatpush2.bf16.msra.mxu0 0
  %337 = vmatprep.mubr.bf16.mxu0 0
  %338 = vmatmul.mubr.bf16.gmra.mxu0 %v303
  %v339 = vpop.f32.mrf.mxu0
  %v340 = vadd.f32 %v288, %v339
  %v341 = vpop.f32.mrf.mxu0
  %v342 = vpop.f32.mrf.mxu0
  %v343 = vadd.f32 %v288, %v342
  %v344 = vpop.f32.mrf.mxu0
  %345 = vdwg.mxu0
  %v346 = vmax.f32 %v340, 0.0
  %v347 = vmax.f32 %v343, 0.0
  %v348 = vadd.f32 %v206, %v346
  %v349 = vadd.f32 %v207, %v347
  %v350 = vpack.c.bf16 %v349, %v348
  %v351 = vld [vmem:[%s12] sm:$0xf]
  %v352 = vld [vmem:[%s12 + $0x4] sm:$0xf]
  %v353 = vld [vmem:[%s12 + $0x8] sm:$0xf]
  %v354 = vld [vmem:[%s12 + $0xc] sm:$0xf]
  %v355 = vld [vmem:[%s13] sm:$0x1]
  %v357 = vlaneseq
  %v358 = vshrl.u32 %v357, 7
  %v359 = vsub.s32 0, %v358
  %v360 = vrot.slane %v355, %v359
  %v366 = vunpack.c.l.b16 %v351
  %v367 = vunpack.c.l.b16 %v352
  %v368 = vunpack.c.l.b16 %v353
  %v369 = vunpack.c.l.b16 %v354
  %v370 = vpack.c.b16 %v367, %v366
  %v371 = vpack.c.b16 %v369, %v368
  %v375 = vsel %vm89, %v350, 0
  %377 = vmatprep.subr.bf16.mxu0 0
  %378 = vmatpush1.bf16.msra.mxu0 0
  %379 = vmatprep.subr.bf16.mxu0 0
  %380 = vmatpush1.bf16.msra.mxu0 0
  %381 = vmatprep.subr.bf16.mxu0 0
  %382 = vmatpush1.bf16.msra.mxu0 0
  %383 = vmatprep.subr.bf16.mxu0 0
  %384 = vmatpush1.bf16.msra.mxu0 0
  %385 = vmatprep.subr.bf16.mxu0 0
  %386 = vmatpush1.bf16.msra.mxu0 0
  %387 = vmatprep.subr.bf16.mxu0 0
  %388 = vmatpush1.bf16.msra.mxu0 0
  %389 = vmatprep.subr.bf16.mxu0 0
  %390 = vmatpush1.bf16.msra.mxu0 %v371
  %391 = vmatprep.subr.bf16.mxu0 0
  %392 = vmatpush1.bf16.msra.mxu0 %v370
  %393 = vmatprep.subr.bf16.mxu0 0
  %394 = vmatpush2.bf16.msra.mxu0 0
  %395 = vmatprep.subr.bf16.mxu0 0
  %396 = vmatpush2.bf16.msra.mxu0 0
  %397 = vmatprep.subr.bf16.mxu0 0
  %398 = vmatpush2.bf16.msra.mxu0 0
  %399 = vmatprep.subr.bf16.mxu0 0
  %400 = vmatpush2.bf16.msra.mxu0 0
  %401 = vmatprep.subr.bf16.mxu0 0
  %402 = vmatpush2.bf16.msra.mxu0 0
  %403 = vmatprep.subr.bf16.mxu0 0
  %404 = vmatpush2.bf16.msra.mxu0 0
  %405 = vmatprep.subr.bf16.mxu0 0
  %406 = vmatpush2.bf16.msra.mxu0 0
  %407 = vmatprep.subr.bf16.mxu0 0
  %408 = vmatpush2.bf16.msra.mxu0 0
  %409 = vmatprep.mubr.bf16.mxu0 0
  %410 = vmatmul.mubr.bf16.gmra.mxu0 %v375
  %v411 = vpop.f32.mrf.mxu0
  %v412 = vadd.f32 %v360, %v411
  %v413 = vpop.f32.mrf.mxu0
  %v414 = vpop.f32.mrf.mxu0
  %v415 = vadd.f32 %v360, %v414
  %v416 = vpop.f32.mrf.mxu0
  %417 = vdwg.mxu0
  %v418 = vsel %vm89, %v412, -inf
  %419 = vmax.xlane.f32.xlu0 %v418
  %v420 = vpop.xlane.xlu0 %419
  %v421 = vsel %vm89, %v415, -inf
  %422 = vmax.xlane.f32.xlu0 %v421
  %v423 = vpop.xlane.xlu0 %422
  %v424 = vsub.f32 %v412, %v420
  %v425 = vsub.f32 %v415, %v423
  %v426 = vmul.f32 %v424, 1.442695
  %v427 = vpow.pop %v426
  %v428 = vmul.f32 %v425, 1.442695
  %v429 = vpow.pop %v428
  %v430 = vsel %vm89, %v427, 0.0
  %431 = vadd.xlane.f32.xlu0 %v430
  %v432 = vpop.xlane.xlu0 %431
  %v433 = vsel %vm89, %v429, 0.0
  %434 = vadd.xlane.f32.xlu0 %v433
  %v435 = vpop.xlane.xlu0 %434
  %v436 = vlog2.pop %v432
  %v437 = vmul.f32 %v436, 0.6931472
  %v438 = vlog2.pop %v435
  %v439 = vmul.f32 %v438, 0.6931472
  %v440 = vadd.f32 %v420, %v437
  %v441 = vadd.f32 %v423, %v439
  %v443 = vunpack.c.l.b16 %v350
  %v444 = vunpack.c.h.b16 %v350
  %v445 = vpack.c.b16 %v443, %v443
  %v446 = vpack.c.b16 %v444, %v444
  %v447 = vld [vmem:[%s2] sm:$0xf]
  %v448 = vld [vmem:[%s2 + $0x4] sm:$0xf]
  %v449 = vld [vmem:[%s2 + $0x8] sm:$0xf]
  %v450 = vld [vmem:[%s2 + $0xc] sm:$0xf]
  %v451 = vld [vmem:[%s2 + $0x10] sm:$0xf]
  %v452 = vld [vmem:[%s2 + $0x14] sm:$0xf]
  %v453 = vld [vmem:[%s2 + $0x18] sm:$0xf]
  %v454 = vld [vmem:[%s2 + $0x1c] sm:$0xf]
  %v455 = vld [vmem:[%s3] sm:$0x1]
  %v456 = vld [vmem:[%s3 + $0x1] sm:$0x1]
  %v459 = vlaneseq
  %v460 = vshrl.u32 %v459, 7
  %v461 = vsub.s32 0, %v460
  %v462 = vrot.slane %v455, %v461
  %v463 = vlaneseq
  %v464 = vshrl.u32 %v463, 7
  %v465 = vsub.s32 0, %v464
  %v466 = vrot.slane %v456, %v465
  %v473 = vunpack.c.l.b16 %v447
  %v474 = vunpack.c.l.b16 %v448
  %v475 = vunpack.c.l.b16 %v449
  %v476 = vunpack.c.l.b16 %v450
  %v477 = vpack.c.b16 %v474, %v473
  %v478 = vpack.c.b16 %v476, %v475
  %v482 = vsel %vm89, %v445, 0
  %484 = vmatprep.subr.bf16.mxu0 0
  %485 = vmatpush1.bf16.msra.mxu0 0
  %486 = vmatprep.subr.bf16.mxu0 0
  %487 = vmatpush1.bf16.msra.mxu0 0
  %488 = vmatprep.subr.bf16.mxu0 0
  %489 = vmatpush1.bf16.msra.mxu0 0
  %490 = vmatprep.subr.bf16.mxu0 0
  %491 = vmatpush1.bf16.msra.mxu0 0
  %492 = vmatprep.subr.bf16.mxu0 0
  %493 = vmatpush1.bf16.msra.mxu0 0
  %494 = vmatprep.subr.bf16.mxu0 0
  %495 = vmatpush1.bf16.msra.mxu0 0
  %496 = vmatprep.subr.bf16.mxu0 0
  %497 = vmatpush1.bf16.msra.mxu0 %v478
  %498 = vmatprep.subr.bf16.mxu0 0
  %499 = vmatpush1.bf16.msra.mxu0 %v477
  %500 = vmatprep.subr.bf16.mxu0 0
  %501 = vmatpush2.bf16.msra.mxu0 0
  %502 = vmatprep.subr.bf16.mxu0 0
  %503 = vmatpush2.bf16.msra.mxu0 0
  %504 = vmatprep.subr.bf16.mxu0 0
  %505 = vmatpush2.bf16.msra.mxu0 0
  %506 = vmatprep.subr.bf16.mxu0 0
  %507 = vmatpush2.bf16.msra.mxu0 0
  %508 = vmatprep.subr.bf16.mxu0 0
  %509 = vmatpush2.bf16.msra.mxu0 0
  %510 = vmatprep.subr.bf16.mxu0 0
  %511 = vmatpush2.bf16.msra.mxu0 0
  %512 = vmatprep.subr.bf16.mxu0 0
  %513 = vmatpush2.bf16.msra.mxu0 0
  %514 = vmatprep.subr.bf16.mxu0 0
  %515 = vmatpush2.bf16.msra.mxu0 0
  %516 = vmatprep.mubr.bf16.mxu0 0
  %517 = vmatmul.mubr.bf16.gmra.mxu0 %v482
  %v518 = vpop.f32.mrf.mxu0
  %v519 = vadd.f32 %v462, %v518
  %v520 = vpop.f32.mrf.mxu0
  %v521 = vpop.f32.mrf.mxu0
  %v522 = vpop.f32.mrf.mxu0
  %523 = vdwg.mxu0
  %v528 = vunpack.c.l.b16 %v451
  %v529 = vunpack.c.l.b16 %v452
  %v530 = vunpack.c.l.b16 %v453
  %v531 = vunpack.c.l.b16 %v454
  %v532 = vpack.c.b16 %v529, %v528
  %v533 = vpack.c.b16 %v531, %v530
  %v537 = vsel %vm89, %v446, 0
  %539 = vmatprep.subr.bf16.mxu0 0
  %540 = vmatpush1.bf16.msra.mxu0 0
  %541 = vmatprep.subr.bf16.mxu0 0
  %542 = vmatpush1.bf16.msra.mxu0 0
  %543 = vmatprep.subr.bf16.mxu0 0
  %544 = vmatpush1.bf16.msra.mxu0 0
  %545 = vmatprep.subr.bf16.mxu0 0
  %546 = vmatpush1.bf16.msra.mxu0 0
  %547 = vmatprep.subr.bf16.mxu0 0
  %548 = vmatpush1.bf16.msra.mxu0 0
  %549 = vmatprep.subr.bf16.mxu0 0
  %550 = vmatpush1.bf16.msra.mxu0 0
  %551 = vmatprep.subr.bf16.mxu0 0
  %552 = vmatpush1.bf16.msra.mxu0 %v533
  %553 = vmatprep.subr.bf16.mxu0 0
  %554 = vmatpush1.bf16.msra.mxu0 %v532
  %555 = vmatprep.subr.bf16.mxu0 0
  %556 = vmatpush2.bf16.msra.mxu0 0
  %557 = vmatprep.subr.bf16.mxu0 0
  %558 = vmatpush2.bf16.msra.mxu0 0
  %559 = vmatprep.subr.bf16.mxu0 0
  %560 = vmatpush2.bf16.msra.mxu0 0
  %561 = vmatprep.subr.bf16.mxu0 0
  %562 = vmatpush2.bf16.msra.mxu0 0
  %563 = vmatprep.subr.bf16.mxu0 0
  %564 = vmatpush2.bf16.msra.mxu0 0
  %565 = vmatprep.subr.bf16.mxu0 0
  %566 = vmatpush2.bf16.msra.mxu0 0
  %567 = vmatprep.subr.bf16.mxu0 0
  %568 = vmatpush2.bf16.msra.mxu0 0
  %569 = vmatprep.subr.bf16.mxu0 0
  %570 = vmatpush2.bf16.msra.mxu0 0
  %571 = vmatprep.mubr.bf16.mxu0 0
  %572 = vmatmul.mubr.bf16.gmra.mxu0 %v537
  %v573 = vpop.f32.mrf.mxu0
  %v574 = vadd.f32 %v466, %v573
  %v575 = vpop.f32.mrf.mxu0
  %v576 = vpop.f32.mrf.mxu0
  %v577 = vpop.f32.mrf.mxu0
  %578 = vdwg.mxu0
  %v579 = vsub.f32 %v519, %v440
  %v580 = vsub.f32 %v574, %v441
  %581 = vst [vmem:[%s14] sm:$0xff] %v579
  %582 = vst [vmem:[%s14 + $0x8] sm:$0xff] %v580
  // Predicated region
  $region58: #{_lambda_.2} parent=0 // pred_check
    _
  $region59: #{_lambda_.2} parent=0 // pred_check_branch
    %584 = sbr.rel (0) target = $region61
  $region60: #{_lambda_.2} parent=0 // pred_region
    _
  $region61: #{_lambda_.2} parent=0 // pred_fallthru
    _
  // Predicated region
  $region62: #{_lambda_.2} parent=0 // pred_check
    _
  $region63: #{_lambda_.2} parent=0 // pred_check_branch
    %586 = sbr.rel (0) target = $region65
  $region64: #{_lambda_.2} parent=0 // pred_region
    _
  $region65: #{_lambda_.2} parent=0 // pred_fallthru
    _

</llo_original>
